<compile_context>
chip_gen: v6e
topology: v6e:2x2x1
jax: 0.10.0
libtpu: 0.0.40
codegen_flags: <defaults>
</compile_context>

<pallas_src>
import functools

import jax
import jax.numpy as jnp
from jax.experimental import pallas as pl
from jax.experimental.pallas import tpu as pltpu

_COLS = 1024  # lane-dense width: 8 vregs wide, multiple of 128


def _plu_kernel(x_ref, o_ref, *, alpha, c):
    x = x_ref[...]
    x1 = alpha * (x + c) - c          # lower linear branch
    x2 = alpha * (x - c) + c          # upper linear branch
    o_ref[...] = jnp.maximum(x1, jnp.minimum(x2, x))


def _round_up(v, m):
    return (v + m - 1) // m * m


@functools.partial(jax.jit, static_argnames=("alpha", "c"))
def plu(x, *, alpha=0.1, c=1.0):
    """Forward pass matching PLU.forward (elementwise, any input shape)."""
    orig_shape = x.shape
    dtype = x.dtype
    itemsize = jnp.dtype(dtype).itemsize
    # Sub-32-bit dtypes pack along sublanes; keep the second-minor dim a
    # multiple of the native packing so stores stay full unmasked vst.
    sub = 8 * max(1, 4 // max(1, itemsize))   # f32->8, bf16->16, int8->32

    flat = x.reshape(-1)
    n = flat.shape[0]

    # Pad only if needed, and only up to one sublane-aligned row group
    # (sub * _COLS elements, <= ~32 KiB) -- never to a multiple of the full
    # block. Aligned inputs (very common for NN activations) pay zero extra
    # HBM traffic: no jnp.pad pass and no trailing-slice pass.
    n_padded = _round_up(n, sub * _COLS)
    padded = n_padded != n
    if padded:
        # Padded elements compute PLU(0) == 0 and are sliced off below.
        flat = jnp.pad(flat, (0, n_padded - n))
    rows = n_padded // _COLS
    a2d = flat.reshape(rows, _COLS)

    # Block selection:
    #  * target ~4 MiB per buffer (e.g. 1024 f32 rows x 1024 lanes); with
    #    in+out double-buffering that's ~16 MiB of VMEM -- fits everywhere
    #    once the scoped limit is raised below,
    #  * prefer >= 4 grid steps for mid-sized inputs so the "parallel" axis
    #    can shard across both TensorCores on v7x instead of a 1-step grid.
    target_rows = max(sub, ((4 << 20) // (_COLS * itemsize)) // sub * sub)
    block_rows = min(target_rows, max(sub, _round_up(pl.cdiv(rows, 4), sub)))
    n_blocks = pl.cdiv(rows, block_rows)   # last block may be partial

    cost = pl.CostEstimate(
        flops=8 * n_padded,                        # ~8 VPU ops per element
        transcendentals=0,
        bytes_accessed=2 * n_padded * itemsize,    # read x + write y
    )

    out2d = pl.pallas_call(
        functools.partial(_plu_kernel, alpha=alpha, c=c),
        out_shape=jax.ShapeDtypeStruct((rows, _COLS), dtype),
        grid_spec=pltpu.PrefetchScalarGridSpec(
            num_scalar_prefetch=0,
            grid=(n_blocks,),
            in_specs=[pl.BlockSpec((block_rows, _COLS), lambda i: (i, 0))],
            out_specs=pl.BlockSpec((block_rows, _COLS), lambda i: (i, 0)),
        ),
        compiler_params=pltpu.CompilerParams(
            dimension_semantics=("parallel",),
            vmem_limit_bytes=40 << 20,   # > v5e's 16 MiB default, < v7x 64 MiB
        ),
        cost_estimate=cost,
        # Alias only when the operand is the fresh padded intermediate.
        input_output_aliases={0: 0} if padded else {},
    )(a2d)

    if padded:
        return out2d.reshape(-1)[:n].reshape(orig_shape)
    return out2d.reshape(orig_shape)


def _plu_ref(x, alpha, c):
    x1 = alpha * (x + c) - c
    x2 = alpha * (x - c) + c
    return jnp.maximum(x1, jnp.minimum(x2, x))


if __name__ == "__main__":
    alpha, c = 0.1, 1.0
    key = jax.random.PRNGKey(0)

    # Main example (padded path): conv-style activation tensor.
    x = jax.random.normal(key, (2, 4, 16, 16), dtype=jnp.float32) * 3.0
    out = plu(x, alpha=alpha, c=c)
    jax.block_until_ready(out)
    assert out.shape == x.shape
    assert jnp.allclose(out, _plu_ref(x, alpha, c), atol=1e-6, rtol=1e-6)

    # No-pad fast path: flat size is a multiple of 8*1024 (f32 row group).
    x2 = jax.random.normal(jax.random.PRNGKey(1), (2, 4, 32, 32),
                           dtype=jnp.float32) * 3.0
    out2 = plu(x2, alpha=alpha, c=c)
    jax.block_until_ready(out2)
    assert jnp.allclose(out2, _plu_ref(x2, alpha, c), atol=1e-6, rtol=1e-6)

    # bf16 path exercises the 16-row sublane packing.
    x3 = (jax.random.normal(jax.random.PRNGKey(2), (3, 5, 7),
                            dtype=jnp.float32) * 3.0).astype(jnp.bfloat16)
    out3 = plu(x3, alpha=alpha, c=c)
    jax.block_until_ready(out3)
    assert jnp.allclose(out3.astype(jnp.float32),
                        _plu_ref(x3, alpha, c).astype(jnp.float32),
                        atol=1e-2, rtol=1e-2)

    print("KERNEL_OK")
</pallas_src>

<mosaic_0001>
module attributes {stable_mosaic.version = 11 : i64} {
  func.func @_plu_kernel(%arg0: i32, %arg1: memref<8x1024xf32, #tpu.memory_space<vmem>>, %arg2: memref<8x1024xf32, #tpu.memory_space<vmem>>) attributes {dimension_semantics = [#tpu.dimension_semantics<parallel>], iteration_bounds = array<i64: 1>, scalar_prefetch = 0 : i64, scratch_operands = 0 : i64, tpu.core_type = #tpu.core_type<tc>, window_params = [{transform_indices = @transform_0, window_bounds = array<i64: 8, 1024>}, {transform_indices = @transform_1, window_bounds = array<i64: 8, 1024>}]} {
    %c0 = arith.constant 0 : index
    %c0_0 = arith.constant 0 : index
    %0 = vector.load %arg1[%c0, %c0_0] : memref<8x1024xf32, #tpu.memory_space<vmem>>, vector<8x1024xf32>
    %cst = arith.constant 1.000000e+00 : f32
    %1 = vector.broadcast %cst : f32 to vector<8x1024xf32>
    %2 = arith.addf %0, %1 : vector<8x1024xf32>
    %cst_1 = arith.constant 1.000000e-01 : f32
    %3 = vector.broadcast %cst_1 : f32 to vector<8x1024xf32>
    %4 = arith.mulf %3, %2 : vector<8x1024xf32>
    %cst_2 = arith.constant 1.000000e+00 : f32
    %5 = vector.broadcast %cst_2 : f32 to vector<8x1024xf32>
    %6 = arith.subf %4, %5 : vector<8x1024xf32>
    %cst_3 = arith.constant 1.000000e+00 : f32
    %7 = vector.broadcast %cst_3 : f32 to vector<8x1024xf32>
    %8 = arith.subf %0, %7 : vector<8x1024xf32>
    %cst_4 = arith.constant 1.000000e-01 : f32
    %9 = vector.broadcast %cst_4 : f32 to vector<8x1024xf32>
    %10 = arith.mulf %9, %8 : vector<8x1024xf32>
    %cst_5 = arith.constant 1.000000e+00 : f32
    %11 = vector.broadcast %cst_5 : f32 to vector<8x1024xf32>
    %12 = arith.addf %10, %11 : vector<8x1024xf32>
    %13 = arith.minimumf %12, %0 : vector<8x1024xf32>
    %14 = arith.maximumf %6, %13 : vector<8x1024xf32>
    %c0_6 = arith.constant 0 : index
    %c0_7 = arith.constant 0 : index
    %15 = vector.load %arg2[%c0_6, %c0_7] : memref<8x1024xf32, #tpu.memory_space<vmem>>, vector<8x1024xf32>
    tpu.vector_store %arg2[%c0_6, %c0_7], %14 {strides = array<i32>} : memref<8x1024xf32, #tpu.memory_space<vmem>>, vector<8x1024xf32>,
    return
  }
  func.func @transform_0(%arg0: i32) -> (i32, i32) {
    %c0_i32 = arith.constant 0 : i32
    %c0_i32_0 = arith.constant 0 : i32
    return %arg0, %c0_i32 : i32, i32
  }
  func.func @transform_1(%arg0: i32) -> (i32, i32) {
    %c0_i32 = arith.constant 0 : i32
    %c0_i32_0 = arith.constant 0 : i32
    return %arg0, %c0_i32 : i32, i32
  }
}

</mosaic_0001>

<llo_original>
// kernel: plu.1
$region0: #{plu.1}
  #allocation0 [shape = 'u32[]', space=smem, size = 0x4, offset = 0x4, fixed_abs, tag = 'smem constant byte address 0x4 - core index']
  #allocation1 [shape = 'u32[144,128]{1,0:T(1,128)}', space=vmem, size = 0x12000, scoped, tag = 'internal scratch']
  %s0 = inlined_call_operand.vmem [shape: f32[8,1024], index: 0, kind: input, shape index: {}, may-alias: {0,1}]
  %s1 = inlined_call_operand.vmem [shape: f32[8,1024], index: 1, kind: output, shape index: {}, may-alias: {0,1}]
  %s2 = sld [smem:[#allocation0]]
  $region14: #{plu.1} parent=0
    _
  %s4 = ssub.s32 1, %s2
  %s5 = scalar_select 0, %s4, %s2
  // Predicated region
  $region2: #{plu.1} parent=0 // pred_check
    _
  $region3: #{plu.1} parent=0 // pred_check_branch
    %7 = sbr.rel (0) target = $region5
  $region4: #{plu.1} parent=0 // pred_region
    _
  $region5: #{plu.1} parent=0 // pred_fallthru
    _
  %v8 = vld [vmem:[%s0] sm:$0xff]
  %v9 = vld [vmem:[%s0 + $0x8] sm:$0xff]
  %v10 = vld [vmem:[%s0 + $0x10] sm:$0xff]
  %v11 = vld [vmem:[%s0 + $0x18] sm:$0xff]
  %v12 = vld [vmem:[%s0 + $0x20] sm:$0xff]
  %v13 = vld [vmem:[%s0 + $0x28] sm:$0xff]
  %v14 = vld [vmem:[%s0 + $0x30] sm:$0xff]
  %v15 = vld [vmem:[%s0 + $0x38] sm:$0xff]
  %v16 = vadd.f32 %v8, 1.0
  %v17 = vadd.f32 %v9, 1.0
  %v18 = vadd.f32 %v10, 1.0
  %v19 = vadd.f32 %v11, 1.0
  %v20 = vadd.f32 %v12, 1.0
  %v21 = vadd.f32 %v13, 1.0
  %v22 = vadd.f32 %v14, 1.0
  %v23 = vadd.f32 %v15, 1.0
  %v24 = vmul.f32 %v16, 0.1
  %v25 = vmul.f32 %v17, 0.1
  %v26 = vmul.f32 %v18, 0.1
  %v27 = vmul.f32 %v19, 0.1
  %v28 = vmul.f32 %v20, 0.1
  %v29 = vmul.f32 %v21, 0.1
  %v30 = vmul.f32 %v22, 0.1
  %v31 = vmul.f32 %v23, 0.1
  %v32 = vsub.f32 %v24, 1.0
  %v33 = vsub.f32 %v25, 1.0
  %v34 = vsub.f32 %v26, 1.0
  %v35 = vsub.f32 %v27, 1.0
  %v36 = vsub.f32 %v28, 1.0
  %v37 = vsub.f32 %v29, 1.0
  %v38 = vsub.f32 %v30, 1.0
  %v39 = vsub.f32 %v31, 1.0
  %v40 = vsub.f32 %v8, 1.0
  %v41 = vsub.f32 %v9, 1.0
  %v42 = vsub.f32 %v10, 1.0
  %v43 = vsub.f32 %v11, 1.0
  %v44 = vsub.f32 %v12, 1.0
  %v45 = vsub.f32 %v13, 1.0
  %v46 = vsub.f32 %v14, 1.0
  %v47 = vsub.f32 %v15, 1.0
  %v48 = vmul.f32 %v40, 0.1
  %v49 = vmul.f32 %v41, 0.1
  %v50 = vmul.f32 %v42, 0.1
  %v51 = vmul.f32 %v43, 0.1
  %v52 = vmul.f32 %v44, 0.1
  %v53 = vmul.f32 %v45, 0.1
  %v54 = vmul.f32 %v46, 0.1
  %v55 = vmul.f32 %v47, 0.1
  %v56 = vadd.f32 %v48, 1.0
  %v57 = vadd.f32 %v49, 1.0
  %v58 = vadd.f32 %v50, 1.0
  %v59 = vadd.f32 %v51, 1.0
  %v60 = vadd.f32 %v52, 1.0
  %v61 = vadd.f32 %v53, 1.0
  %v62 = vadd.f32 %v54, 1.0
  %v63 = vadd.f32 %v55, 1.0
  %v64 = vmin.f32 %v56, %v8
  %v65 = vmin.f32 %v57, %v9
  %v66 = vmin.f32 %v58, %v10
  %v67 = vmin.f32 %v59, %v11
  %v68 = vmin.f32 %v60, %v12
  %v69 = vmin.f32 %v61, %v13
  %v70 = vmin.f32 %v62, %v14
  %v71 = vmin.f32 %v63, %v15
  %v72 = vmax.f32 %v32, %v64
  %v73 = vmax.f32 %v33, %v65
  %v74 = vmax.f32 %v34, %v66
  %v75 = vmax.f32 %v35, %v67
  %v76 = vmax.f32 %v36, %v68
  %v77 = vmax.f32 %v37, %v69
  %v78 = vmax.f32 %v38, %v70
  %v79 = vmax.f32 %v39, %v71
  %80 = vst [vmem:[%s1] sm:$0xff] %v72
  %81 = vst [vmem:[%s1 + $0x8] sm:$0xff] %v73
  %82 = vst [vmem:[%s1 + $0x10] sm:$0xff] %v74
  %83 = vst [vmem:[%s1 + $0x18] sm:$0xff] %v75
  %84 = vst [vmem:[%s1 + $0x20] sm:$0xff] %v76
  %85 = vst [vmem:[%s1 + $0x28] sm:$0xff] %v77
  %86 = vst [vmem:[%s1 + $0x30] sm:$0xff] %v78
  %87 = vst [vmem:[%s1 + $0x38] sm:$0xff] %v79
  // Predicated region
  $region6: #{plu.1} parent=0 // pred_check
    _
  $region7: #{plu.1} parent=0 // pred_check_branch
    %89 = sbr.rel (0) target = $region9
  $region8: #{plu.1} parent=0 // pred_region
    _
  $region9: #{plu.1} parent=0 // pred_fallthru
    _
  // Predicated region
  $region10: #{plu.1} parent=0 // pred_check
    _
  $region11: #{plu.1} parent=0 // pred_check_branch
    %91 = sbr.rel (0) target = $region13
  $region12: #{plu.1} parent=0 // pred_region
    _
  $region13: #{plu.1} parent=0 // pred_fallthru
    _

</llo_original>
